<compile_context>
chip_gen: v7x
topology: tpu7x:2x2x1
jax: 0.10.0
libtpu: 0.0.40
codegen_flags: <defaults>
</compile_context>

<pallas_src>
import jax
import jax.numpy as jnp
import numpy as np
from jax.experimental import pallas as pl
from jax.experimental.pallas import tpu as pltpu


# ----------------------------------------------------------------------------- utils
def _round_up(x, m):
    return ((x + m - 1) // m) * m


def _pick_score_tiles(n, wc, budget=12 * 1024 * 1024):
    """Row/column tiles for the adj @ t kernel.

    Conservative budget (4-byte streams assumed even when bf16 is used):
      2*tm*tk*4 (adj double-buffer) + 2*tk*wc*4 (t double-buffer)
      + tm*wc*4 (f32 accumulator)  <= budget  (well under every scoped default).
    """
    tk = min(512, _round_up(n, 128))
    rem = budget - 8 * tk * wc
    tm = max(16, rem // (8 * tk + 4 * wc))
    tm = (tm // 16) * 16
    tm = max(16, min(tm, 1024))
    tm = min(tm, _round_up(n, 16))
    return tm, tk


def _pick_project_tile(n_rows, f, h, budget=12 * 1024 * 1024):
    """Row tile for the (2N, F) @ (F, H) projection (weight kept resident)."""
    rem = budget - 8 * f * h              # resident weight (double-buffer worst case)
    tp = max(16, rem // (8 * f + 4 * h))  # seq double-buffer + output
    tp = (tp // 16) * 16
    tp = max(16, min(tp, 2048))
    tp = min(tp, _round_up(n_rows, 16))
    return tp


# ----------------------------------------------------------------------------- kernels
def gdsa_project_kernel(seq_ref, wfc_ref, t_ref):
    # t_rows = seq_rows @ Wfc   (both branches are stacked along rows in the wrapper)
    t_ref[...] = jnp.dot(seq_ref[...], wfc_ref[...],
                         preferred_element_type=jnp.float32).astype(t_ref.dtype)


def gdsa_score_kernel(alpha_ref, bsum_ref, adj_ref, t_ref, bfc_ref, w2_ref,
                      out_ref, acc_ref):
    # acc += adj_tile @ t_tile  over the K grid axis; epilogue on the last K step:
    #   g = acc + bfc ; h = PReLU(g) ; out = h @ [wsum|0 ; 0|wsum] + blin.sum()
    k = pl.program_id(1)

    @pl.when(k == 0)
    def _():
        acc_ref[...] = jnp.zeros_like(acc_ref)

    acc_ref[...] += jnp.dot(adj_ref[...], t_ref[...],
                            preferred_element_type=jnp.float32)

    @pl.when(k == pl.num_programs(1) - 1)
    def _():
        g = acc_ref[...] + bfc_ref[...]
        alpha = alpha_ref[0]                      # SMEM scalar
        h = jnp.where(g > 0, g, alpha * g)
        out_ref[...] = (jnp.dot(h, w2_ref[...], preferred_element_type=jnp.float32)
                        + bsum_ref[0])


# ----------------------------------------------------------------------------- wrappers
def _project(seq_stack, wfc, tp, out_dtype):
    S, F = seq_stack.shape
    H = wfc.shape[1]
    grid = (pl.cdiv(S, tp),)
    return pl.pallas_call(
        gdsa_project_kernel,
        out_shape=jax.ShapeDtypeStruct((S, H), out_dtype),
        grid_spec=pltpu.PrefetchScalarGridSpec(
            num_scalar_prefetch=0,
            grid=grid,
            in_specs=[
                pl.BlockSpec((tp, F), lambda i: (i, 0)),   # stacked seq rows
                pl.BlockSpec((F, H), lambda i: (0, 0)),    # Wfc (resident)
            ],
            out_specs=pl.BlockSpec((tp, H), lambda i: (i, 0)),
        ),
        compiler_params=pltpu.CompilerParams(
            dimension_semantics=("parallel",),
            vmem_limit_bytes=32 * 1024 * 1024),
        cost_estimate=pl.CostEstimate(
            flops=2 * S * F * H,
            transcendentals=0,
            bytes_accessed=4 * S * F + 4 * F * H
                           + S * H * jnp.dtype(out_dtype).itemsize),
    )(seq_stack, wfc)


def _gcn_score(adj_p, t_cat, bfc_cat, w2, alpha_s, bsum, tm, tk):
    Mp, Kp = adj_p.shape
    Wc = t_cat.shape[1]
    grid = (Mp // tm, Kp // tk)
    itemsize = adj_p.dtype.itemsize
    return pl.pallas_call(
        gdsa_score_kernel,
        out_shape=jax.ShapeDtypeStruct((Mp, 2), jnp.float32),
        grid_spec=pltpu.PrefetchScalarGridSpec(
            num_scalar_prefetch=0,
            grid=grid,
            in_specs=[
                pl.BlockSpec(memory_space=pltpu.MemorySpace.SMEM),   # alpha (1,)
                pl.BlockSpec(memory_space=pltpu.MemorySpace.SMEM),   # blin.sum() (1,)
                pl.BlockSpec((tm, tk), lambda i, k: (i, k)),         # adj tile
                pl.BlockSpec((tk, Wc), lambda i, k: (k, 0)),         # fused t tile
                pl.BlockSpec((1, Wc), lambda i, k: (0, 0)),          # fused GCN bias
                pl.BlockSpec((Wc, 2), lambda i, k: (0, 0)),          # folded Linear+sum
            ],
            out_specs=pl.BlockSpec((tm, 2), lambda i, k: (i, 0)),
            scratch_shapes=[pltpu.VMEM((tm, Wc), jnp.float32)],
        ),
        compiler_params=pltpu.CompilerParams(
            dimension_semantics=("parallel", "arbitrary"),
            vmem_limit_bytes=32 * 1024 * 1024),
        cost_estimate=pl.CostEstimate(
            flops=2 * Mp * Kp * Wc + 2 * Mp * Wc * 2,
            transcendentals=0,
            bytes_accessed=(Mp * Kp * itemsize
                            + (Mp // tm) * Kp * Wc * itemsize
                            + Mp * 2 * 4 + Wc * 4 + Wc * 2 * 4)),
    )(alpha_s, bsum, adj_p, t_cat, bfc_cat, w2)


def gdsa_train_forward(seq1, seq2, adj, params, *,
                       stream_dtype=jnp.bfloat16, tm=None, tk=None, tp=None):
    """seq1, seq2: (1, N, F); adj: (N, N) dense f32.  Returns logits (1, 2N).

    stream_dtype controls the dtype in which adj and t are streamed through the
    (HBM-bound) score kernel; accumulation is always f32 on the MXU.
    """
    wfc, bfc, wlin, blin, alpha = params
    F, H = wfc.shape
    N = adj.shape[0]
    Wc = _round_up(2 * H, 128)                       # lane-dense fused hidden width

    tm_auto, tk_auto = _pick_score_tiles(N, Wc)
    tm = tm if tm is not None else tm_auto
    tk = tk if tk is not None else tk_auto
    tp = tp if tp is not None else _pick_project_tile(2 * N, F, H)

    # --- projection: one (2N, F) @ (F, H) matmul (both branches stacked on rows)
    seq_stack = jnp.concatenate([seq1[0], seq2[0]], axis=0)          # (2N, F)
    t_stack = _project(seq_stack, wfc.astype(jnp.float32), tp, stream_dtype)  # (2N, H)
    t1, t2 = t_stack[:N], t_stack[N:2 * N]

    # --- pack t = [t1 | t2] lane-concatenated, zero-padded to tile multiples ---
    Mp = _round_up(N, tm)
    Kp = _round_up(N, tk)
    t_cat = jnp.zeros((Kp, Wc), stream_dtype)
    t_cat = t_cat.at[:N, :H].set(t1).at[:N, H:2 * H].set(t2)
    adj_p = jnp.zeros((Mp, Kp), stream_dtype).at[:N, :N].set(adj.astype(stream_dtype))

    # --- folded parameters (one-time, cheap) -----------------------------------
    bfc_cat = jnp.zeros((1, Wc), jnp.float32)
    bfc_cat = bfc_cat.at[0, :H].set(bfc).at[0, H:2 * H].set(bfc)
    # (h @ Wlin + blin).sum(1) == h @ Wlin.sum(1) + blin.sum()
    wsum = jnp.sum(wlin, axis=1)
    w2 = jnp.zeros((Wc, 2), jnp.float32)
    w2 = w2.at[:H, 0].set(wsum).at[H:2 * H, 1].set(wsum)
    bsum = jnp.sum(blin).astype(jnp.float32).reshape(1)
    alpha_s = jnp.asarray(alpha, jnp.float32).reshape(1)

    scores = _gcn_score(adj_p, t_cat, bfc_cat, w2, alpha_s, bsum, tm, tk)  # (Mp, 2)
    scores = scores[:N]
    logits = jnp.concatenate([scores[:, 0], scores[:, 1]])[None, :]        # (1, 2N)
    return logits


# ----------------------------------------------------------------------------- reference
def gdsa_train_reference(seq1, seq2, adj, params):
    wfc, bfc, wlin, blin, alpha = params

    def branch(seq):
        t = seq[0] @ wfc
        g = adj @ t + bfc
        h = jnp.where(g > 0, g, alpha * g)
        s = h @ wlin + blin
        return s.sum(axis=1)

    return jnp.concatenate([branch(seq1), branch(seq2)])[None, :]


# ----------------------------------------------------------------------------- demo
if __name__ == "__main__":
    key0, key1 = jax.random.split(jax.random.PRNGKey(0))

    def make_inputs(key, N, n_in, n_h):
        k1, k2, k3, k4, k5, k6 = jax.random.split(key, 6)
        seq1 = jax.random.normal(k1, (1, N, n_in), dtype=jnp.float32)
        seq2 = jax.random.normal(k2, (1, N, n_in), dtype=jnp.float32)
        # Symmetric, row-normalized dense adjacency (sparse=False path).
        a = jax.random.uniform(k3, (N, N), dtype=jnp.float32)
        a = (a + a.T) * 0.5 + jnp.eye(N, dtype=jnp.float32)
        adj = a / jnp.sum(a, axis=1, keepdims=True)
        # Weights stored transposed vs. torch so forward is x @ W.
        wfc = 0.1 * jax.random.normal(k4, (n_in, n_h), dtype=jnp.float32)
        bfc = jnp.zeros((n_h,), dtype=jnp.float32)
        wlin = 0.1 * jax.random.normal(k5, (n_h, n_h), dtype=jnp.float32)
        blin = 0.1 * jax.random.normal(k6, (n_h,), dtype=jnp.float32)
        alpha = jnp.float32(0.25)
        return seq1, seq2, adj, (wfc, bfc, wlin, blin, alpha)

    # --- test 1: tiny shapes, exact f32 streaming path -------------------------
    N, n_in, n_h = 8, 16, 32
    seq1, seq2, adj, params = make_inputs(key0, N, n_in, n_h)
    fwd_f32 = jax.jit(lambda s1, s2, a, p: gdsa_train_forward(
        s1, s2, a, p, stream_dtype=jnp.float32))
    out = jax.block_until_ready(fwd_f32(seq1, seq2, adj, params))
    ref = jax.block_until_ready(gdsa_train_reference(seq1, seq2, adj, params))
    assert out.shape == (1, 2 * N), out.shape
    np.testing.assert_allclose(np.asarray(out), np.asarray(ref), rtol=1e-4, atol=1e-4)

    # --- test 2: multi-tile grid (N not a tile multiple), bf16 streaming -------
    N2, n_in2, n_h2 = 200, 16, 32
    seq1b, seq2b, adjb, paramsb = make_inputs(key1, N2, n_in2, n_h2)
    fwd_bf16 = jax.jit(lambda s1, s2, a, p: gdsa_train_forward(
        s1, s2, a, p, stream_dtype=jnp.bfloat16, tm=64, tk=128, tp=128))
    out2 = jax.block_until_ready(fwd_bf16(seq1b, seq2b, adjb, paramsb))
    ref2 = jax.block_until_ready(gdsa_train_reference(seq1b, seq2b, adjb, paramsb))
    assert out2.shape == (1, 2 * N2), out2.shape
    np.testing.assert_allclose(np.asarray(out2), np.asarray(ref2), rtol=2e-2, atol=2e-2)

    print("KERNEL_OK")
</pallas_src>

<mosaic_0001>
module attributes {stable_mosaic.version = 11 : i64} {
  func.func @gdsa_project_kernel(%arg0: i32, %arg1: memref<16x16xf32, #tpu.memory_space<vmem>>, %arg2: memref<16x32xf32, #tpu.memory_space<vmem>>, %arg3: memref<16x32xf32, #tpu.memory_space<vmem>>) attributes {dimension_semantics = [#tpu.dimension_semantics<parallel>], iteration_bounds = array<i64: 1>, scalar_prefetch = 0 : i64, scratch_operands = 0 : i64, tpu.core_type = #tpu.core_type<tc>, window_params = [{transform_indices = @transform_0, window_bounds = array<i64: 16, 16>}, {pipeline_mode = #tpu.pipeline_mode<synchronous>, transform_indices = @transform_1, window_bounds = array<i64: 16, 32>}, {transform_indices = @transform_2, window_bounds = array<i64: 16, 32>}]} {
    %c0 = arith.constant 0 : index
    %c0_0 = arith.constant 0 : index
    %0 = vector.load %arg1[%c0, %c0_0] : memref<16x16xf32, #tpu.memory_space<vmem>>, vector<16x16xf32>
    %c0_1 = arith.constant 0 : index
    %c0_2 = arith.constant 0 : index
    %1 = vector.load %arg2[%c0_1, %c0_2] : memref<16x32xf32, #tpu.memory_space<vmem>>, vector<16x32xf32>
    %cst = arith.constant dense<0.000000e+00> : vector<16x32xf32>
    %2 = tpu.matmul %0, %1, %cst {dimension_numbers = #tpu.dot_dimension_numbers<[1], [0], [0], [1], [0, 0, 1, 1], [], []>} : vector<16x16xf32>, vector<16x32xf32>, vector<16x32xf32> -> vector<16x32xf32>
    %c0_3 = arith.constant 0 : index
    %c0_4 = arith.constant 0 : index
    %3 = vector.load %arg3[%c0_3, %c0_4] : memref<16x32xf32, #tpu.memory_space<vmem>>, vector<16x32xf32>
    tpu.vector_store %arg3[%c0_3, %c0_4], %2 {strides = array<i32>} : memref<16x32xf32, #tpu.memory_space<vmem>>, vector<16x32xf32>,
    return
  }
  func.func @transform_0(%arg0: i32) -> (i32, i32) {
    %c0_i32 = arith.constant 0 : i32
    %c0_i32_0 = arith.constant 0 : i32
    return %arg0, %c0_i32 : i32, i32
  }
  func.func @transform_1(%arg0: i32) -> (i32, i32) {
    %c0_i32 = arith.constant 0 : i32
    %c0_i32_0 = arith.constant 0 : i32
    %c0_i32_1 = arith.constant 0 : i32
    return %c0_i32, %c0_i32_0 : i32, i32
  }
  func.func @transform_2(%arg0: i32) -> (i32, i32) {
    %c0_i32 = arith.constant 0 : i32
    %c0_i32_0 = arith.constant 0 : i32
    return %arg0, %c0_i32 : i32, i32
  }
}

module attributes {stable_mosaic.version = 11 : i64} {
  func.func @gdsa_score_kernel(%arg0: i32, %arg1: i32, %arg2: memref<1xf32, #tpu.memory_space<smem>>, %arg3: memref<1xf32, #tpu.memory_space<smem>>, %arg4: memref<16x128xf32, #tpu.memory_space<vmem>>, %arg5: memref<128x128xf32, #tpu.memory_space<vmem>>, %arg6: memref<1x128xf32, #tpu.memory_space<vmem>>, %arg7: memref<128x2xf32, #tpu.memory_space<vmem>>, %arg8: memref<16x2xf32, #tpu.memory_space<vmem>>, %arg9: memref<16x128xf32, #tpu.memory_space<vmem>>) attributes {dimension_semantics = [#tpu.dimension_semantics<parallel>, #tpu.dimension_semantics<arbitrary>], iteration_bounds = array<i64: 1, 1>, scalar_prefetch = 0 : i64, scratch_operands = 1 : i64, tpu.core_type = #tpu.core_type<tc>, window_params = [{transform_indices = @transform_0, window_bounds = array<i64: 1>}, {transform_indices = @transform_1, window_bounds = array<i64: 1>}, {transform_indices = @transform_2, window_bounds = array<i64: 16, 128>}, {transform_indices = @transform_3, window_bounds = array<i64: 128, 128>}, {pipeline_mode = #tpu.pipeline_mode<synchronous>, transform_indices = @transform_4, window_bounds = array<i64: 1, 128>}, {pipeline_mode = #tpu.pipeline_mode<synchronous>, transform_indices = @transform_5, window_bounds = array<i64: 128, 2>}, {transform_indices = @transform_6, window_bounds = array<i64: 16, 2>}]} {
    %c0_i32 = arith.constant 0 : i32
    %0 = arith.cmpi eq, %arg1, %c0_i32 : i32
    %1 = arith.extui %0 : i1 to i32
    %c0_i32_0 = arith.constant 0 : i32
    %2 = arith.cmpi ne, %1, %c0_i32_0 : i32
    scf.if %2 {
      %cst_10 = arith.constant 0.000000e+00 : f32
      %12 = vector.broadcast %cst_10 : f32 to vector<16x128xf32>
      %c0_11 = arith.constant 0 : index
      %c0_12 = arith.constant 0 : index
      %13 = vector.load %arg9[%c0_11, %c0_12] : memref<16x128xf32, #tpu.memory_space<vmem>>, vector<16x128xf32>
      tpu.vector_store %arg9[%c0_11, %c0_12], %12 {strides = array<i32>} : memref<16x128xf32, #tpu.memory_space<vmem>>, vector<16x128xf32>,
    } else {
    }
    %c0 = arith.constant 0 : index
    %c0_1 = arith.constant 0 : index
    %3 = vector.load %arg9[%c0, %c0_1] : memref<16x128xf32, #tpu.memory_space<vmem>>, vector<16x128xf32>
    %c0_2 = arith.constant 0 : index
    %c0_3 = arith.constant 0 : index
    %4 = vector.load %arg4[%c0_2, %c0_3] : memref<16x128xf32, #tpu.memory_space<vmem>>, vector<16x128xf32>
    %c0_4 = arith.constant 0 : index
    %c0_5 = arith.constant 0 : index
    %5 = vector.load %arg5[%c0_4, %c0_5] : memref<128x128xf32, #tpu.memory_space<vmem>>, vector<128x128xf32>
    %cst = arith.constant dense<0.000000e+00> : vector<16x128xf32>
    %6 = tpu.matmul %4, %5, %cst {dimension_numbers = #tpu.dot_dimension_numbers<[1], [0], [0], [1], [0, 0, 1, 1], [], []>} : vector<16x128xf32>, vector<128x128xf32>, vector<16x128xf32> -> vector<16x128xf32>
    %7 = arith.addf %3, %6 : vector<16x128xf32>
    %c0_6 = arith.constant 0 : index
    %c0_7 = arith.constant 0 : index
    %8 = vector.load %arg9[%c0_6, %c0_7] : memref<16x128xf32, #tpu.memory_space<vmem>>, vector<16x128xf32>
    tpu.vector_store %arg9[%c0_6, %c0_7], %7 {strides = array<i32>} : memref<16x128xf32, #tpu.memory_space<vmem>>, vector<16x128xf32>,
    %c0_i32_8 = arith.constant 0 : i32
    %9 = arith.cmpi eq, %arg1, %c0_i32_8 : i32
    %10 = arith.extui %9 : i1 to i32
    %c0_i32_9 = arith.constant 0 : i32
    %11 = arith.cmpi ne, %10, %c0_i32_9 : i32
    scf.if %11 {
      %c0_10 = arith.constant 0 : index
      %c0_11 = arith.constant 0 : index
      %12 = vector.load %arg9[%c0_10, %c0_11] : memref<16x128xf32, #tpu.memory_space<vmem>>, vector<16x128xf32>
      %c0_12 = arith.constant 0 : index
      %c0_13 = arith.constant 0 : index
      %13 = vector.load %arg6[%c0_12, %c0_13] : memref<1x128xf32, #tpu.memory_space<vmem>>, vector<1x128xf32>
      %14 = vector.broadcast %13 : vector<1x128xf32> to vector<16x128xf32>
      %15 = arith.addf %12, %14 : vector<16x128xf32>
      %c0_14 = arith.constant 0 : index
      %16 = memref.load %arg2[%c0_14] : memref<1xf32, #tpu.memory_space<smem>>
      %cst_15 = arith.constant 0.000000e+00 : f32
      %17 = vector.broadcast %cst_15 : f32 to vector<16x128xf32>
      %18 = arith.cmpf ogt, %15, %17 : vector<16x128xf32>
      %19 = vector.broadcast %16 : f32 to vector<16x128xf32>
      %20 = arith.mulf %19, %15 : vector<16x128xf32>
      %21 = arith.select %18, %15, %20 : vector<16x128xi1>, vector<16x128xf32>
      %c0_16 = arith.constant 0 : index
      %c0_17 = arith.constant 0 : index
      %22 = vector.load %arg7[%c0_16, %c0_17] : memref<128x2xf32, #tpu.memory_space<vmem>>, vector<128x2xf32>
      %cst_18 = arith.constant dense<0.000000e+00> : vector<16x2xf32>
      %23 = tpu.matmul %21, %22, %cst_18 {dimension_numbers = #tpu.dot_dimension_numbers<[1], [0], [0], [1], [0, 0, 1, 1], [], []>} : vector<16x128xf32>, vector<128x2xf32>, vector<16x2xf32> -> vector<16x2xf32>
      %c0_19 = arith.constant 0 : index
      %24 = memref.load %arg3[%c0_19] : memref<1xf32, #tpu.memory_space<smem>>
      %25 = vector.broadcast %24 : f32 to vector<16x2xf32>
      %26 = arith.addf %23, %25 : vector<16x2xf32>
      %c0_20 = arith.constant 0 : index
      %c0_21 = arith.constant 0 : index
      %27 = vector.load %arg8[%c0_20, %c0_21] : memref<16x2xf32, #tpu.memory_space<vmem>>, vector<16x2xf32>
      tpu.vector_store %arg8[%c0_20, %c0_21], %26 {strides = array<i32>} : memref<16x2xf32, #tpu.memory_space<vmem>>, vector<16x2xf32>,
    } else {
    }
    return
  }
  func.func @transform_0(%arg0: i32, %arg1: i32) -> i32 {
    %c0_i32 = arith.constant 0 : i32
    %c0_i32_0 = arith.constant 0 : i32
    return %c0_i32 : i32
  }
  func.func @transform_1(%arg0: i32, %arg1: i32) -> i32 {
    %c0_i32 = arith.constant 0 : i32
    %c0_i32_0 = arith.constant 0 : i32
    return %c0_i32 : i32
  }
  func.func @transform_2(%arg0: i32, %arg1: i32) -> (i32, i32) {
    %c0_i32 = arith.constant 0 : i32
    return %arg0, %arg1 : i32, i32
  }
  func.func @transform_3(%arg0: i32, %arg1: i32) -> (i32, i32) {
    %c0_i32 = arith.constant 0 : i32
    %c0_i32_0 = arith.constant 0 : i32
    return %arg1, %c0_i32 : i32, i32
  }
  func.func @transform_4(%arg0: i32, %arg1: i32) -> (i32, i32) {
    %c0_i32 = arith.constant 0 : i32
    %c0_i32_0 = arith.constant 0 : i32
    %c0_i32_1 = arith.constant 0 : i32
    return %c0_i32, %c0_i32_0 : i32, i32
  }
  func.func @transform_5(%arg0: i32, %arg1: i32) -> (i32, i32) {
    %c0_i32 = arith.constant 0 : i32
    %c0_i32_0 = arith.constant 0 : i32
    %c0_i32_1 = arith.constant 0 : i32
    return %c0_i32, %c0_i32_0 : i32, i32
  }
  func.func @transform_6(%arg0: i32, %arg1: i32) -> (i32, i32) {
    %c0_i32 = arith.constant 0 : i32
    %c0_i32_0 = arith.constant 0 : i32
    return %arg0, %c0_i32 : i32, i32
  }
}

</mosaic_0001>

<llo_original>
// kernel: _lambda_.2
$region0: #{_lambda_.2}
  #allocation0 [shape = 'u32[]', space=smem, size = 0x4, offset = 0x4, fixed_abs, tag = 'smem constant byte address 0x4 - core index']
  #allocation1 [shape = 'u32[144,128]{1,0:T(1,128)}', space=vmem, size = 0x12000, scoped, tag = 'internal scratch']
  %s0 = inlined_call_operand.vmem [shape: f32[16,16], index: 0, kind: input, shape index: {}]
  %s1 = inlined_call_operand.vmem [shape: f32[16,32], index: 1, kind: input, shape index: {}]
  %s2 = inlined_call_operand.vmem [shape: f32[16,32], index: 2, kind: output, shape index: {}]
  %s3 = sld [smem:[#allocation0]]
  $region18: #{_lambda_.2} parent=0
    _
  %s5 = ssub.s32 1, %s3
  %s6 = scalar_select 0, %s5, %s3
  // Predicated region
  $region2: #{_lambda_.2} parent=0 // pred_check
    _
  $region3: #{_lambda_.2} parent=0 // pred_check_branch
    %8 = sbr.rel (0) target = $region5
  $region4: #{_lambda_.2} parent=0 // pred_region
    _
  $region5: #{_lambda_.2} parent=0 // pred_fallthru
    _
  // Predicated region
  $region6: #{_lambda_.2} parent=0 // pred_check
    _
  $region7: #{_lambda_.2} parent=0 // pred_check_branch
    %10 = sbr.rel (0) target = $region9
  $region8: #{_lambda_.2} parent=0 // pred_region
    _
  $region9: #{_lambda_.2} parent=0 // pred_fallthru
    _
  %v11 = vld [vmem:[%s0] sm:$0xff]
  %v12 = vld [vmem:[%s0 + $0x8] sm:$0xff]
  %v13 = vld [vmem:[%s1] sm:$0xff]
  %v14 = vld [vmem:[%s1 + $0x8] sm:$0xff]
  %vm15 = vcmask 130048
  %v17 = vsel %vm15, %v11, 0
  %v20 = vsel %vm15, %v12, 0
  %22 = vmatprep.subr.mxu0 0.0
  %23 = vmatpush1.msra.mxu0 %v13
  %24 = vmatprep.subr.mxu0 0.0
  %25 = vmatpush1.msra.mxu0 %v14
  %26 = vmatprep.subr.mxu0 0.0
  %27 = vmatpush1.msra.mxu0 0.0
  %28 = vmatprep.subr.mxu0 0.0
  %29 = vmatpush1.msra.mxu0 0.0
  %30 = vmatprep.subr.mxu0 0.0
  %31 = vmatpush1.msra.mxu0 0.0
  %32 = vmatprep.subr.mxu0 0.0
  %33 = vmatpush1.msra.mxu0 0.0
  %34 = vmatprep.subr.mxu0 0.0
  %35 = vmatpush1.msra.mxu0 0.0
  %36 = vmatprep.subr.mxu0 0.0
  %37 = vmatpush1.msra.mxu0 0.0
  %38 = vmatprep.subr.mxu0 0.0
  %39 = vmatpush1.msra.mxu0 0.0
  %40 = vmatprep.subr.mxu0 0.0
  %41 = vmatpush1.msra.mxu0 0.0
  %42 = vmatprep.subr.mxu0 0.0
  %43 = vmatpush1.msra.mxu0 0.0
  %44 = vmatprep.subr.mxu0 0.0
  %45 = vmatpush1.msra.mxu0 0.0
  %46 = vmatprep.subr.mxu0 0.0
  %47 = vmatpush1.msra.mxu0 0.0
  %48 = vmatprep.subr.mxu0 0.0
  %49 = vmatpush1.msra.mxu0 0.0
  %50 = vmatprep.subr.mxu0 0.0
  %51 = vmatpush1.msra.mxu0 0.0
  %52 = vmatprep.subr.mxu0 0.0
  %53 = vmatpush1.msra.mxu0 0.0
  %54 = vmatprep.subr.mxu0 0.0
  %55 = vmatpush1.msra.mxu0 0.0
  %56 = vmatprep.subr.mxu0 0.0
  %57 = vmatpush1.msra.mxu0 0.0
  %58 = vmatprep.subr.mxu0 0.0
  %59 = vmatpush1.msra.mxu0 0.0
  %60 = vmatprep.subr.mxu0 0.0
  %61 = vmatpush1.msra.mxu0 0.0
  %62 = vmatprep.subr.mxu0 0.0
  %63 = vmatpush1.msra.mxu0 0.0
  %64 = vmatprep.subr.mxu0 0.0
  %65 = vmatpush1.msra.mxu0 0.0
  %66 = vmatprep.subr.mxu0 0.0
  %67 = vmatpush1.msra.mxu0 0.0
  %68 = vmatprep.subr.mxu0 0.0
  %69 = vmatpush1.msra.mxu0 0.0
  %70 = vmatprep.subr.mxu0 0.0
  %71 = vmatpush1.msra.mxu0 0.0
  %72 = vmatprep.subr.mxu0 0.0
  %73 = vmatpush1.msra.mxu0 0.0
  %74 = vmatprep.subr.mxu0 0.0
  %75 = vmatpush1.msra.mxu0 0.0
  %76 = vmatprep.subr.mxu0 0.0
  %77 = vmatpush1.msra.mxu0 0.0
  %78 = vmatprep.subr.mxu0 0.0
  %79 = vmatpush1.msra.mxu0 0.0
  %80 = vmatprep.subr.mxu0 0.0
  %81 = vmatpush1.msra.mxu0 0.0
  %82 = vmatprep.subr.mxu0 0.0
  %83 = vmatpush1.msra.mxu0 0.0
  %84 = vmatprep.subr.mxu0 0.0
  %85 = vmatpush1.msra.mxu0 0.0
  %86 = vmatprep.mubr.f32.mxu0 0.0
  %87 = vmatmul.mubr.f32.gmra.mrb[0].mxu0 %v17
  %v88 = vpop.f32.mrb[0].mxu0
  %v89 = vadd.f32 0.0, %v88
  %v90 = vpop.f32.mrb[0].mxu0
  %91 = vmatprep.mubr.f32.mxu0 0.0
  %92 = vmatmul.mubr.f32.gmra.mrb[0].mxu0 %v20
  %v93 = vpop.f32.mrb[0].mxu0
  %v94 = vadd.f32 0.0, %v93
  %v95 = vpop.f32.mrb[0].mxu0
  %96 = vdwg.mxu0
  %vm97 = vcmask 261120
  %98 = vst.msk [vmem:[%s2] sm:$0xff] %vm97, %v89
  %99 = vst.msk [vmem:[%s2 + $0x8] sm:$0xff] %vm97, %v94
  // Predicated region
  $region10: #{_lambda_.2} parent=0 // pred_check
    _
  $region11: #{_lambda_.2} parent=0 // pred_check_branch
    %101 = sbr.rel (0) target = $region13
  $region12: #{_lambda_.2} parent=0 // pred_region
    _
  $region13: #{_lambda_.2} parent=0 // pred_fallthru
    _
  // Predicated region
  $region14: #{_lambda_.2} parent=0 // pred_check
    _
  $region15: #{_lambda_.2} parent=0 // pred_check_branch
    %103 = sbr.rel (0) target = $region17
  $region16: #{_lambda_.2} parent=0 // pred_region
    _
  $region17: #{_lambda_.2} parent=0 // pred_fallthru
    _

// kernel: _lambda_.3
$region0: #{_lambda_.3}
  #allocation0 [shape = 'u32[]', space=smem, size = 0x4, offset = 0x4, fixed_abs, tag = 'smem constant byte address 0x4 - core index']
  #allocation1 [shape = 'u32[144,128]{1,0:T(1,128)}', space=vmem, size = 0x12000, scoped, tag = 'internal scratch']
  #allocation2 [shape = 'f32[16,128]{1,0:T(8,128)}', space=vmem, size = 0x2000, scoped, tag = 'scratch operand']
  #allocation3 [shape = 'f32[1]{0:T(128)S(6)}', space=smem, size = 0x200, scoped, tag = 'scoped memory for _lambda_.3']
  #allocation4 [shape = 'f32[1]{0:T(128)S(6)}', space=smem, size = 0x200, scoped, tag = 'scoped memory for _lambda_.3']
  %s0 = inlined_call_operand.<no memory space> [shape: f32[1], index: 0, kind: input, shape index: {}]
  %s1 = inlined_call_operand.<no memory space> [shape: f32[1], index: 1, kind: input, shape index: {}]
  %s2 = inlined_call_operand.vmem [shape: f32[16,128], index: 2, kind: input, shape index: {}]
  %s3 = inlined_call_operand.vmem [shape: f32[128,128], index: 3, kind: input, shape index: {}]
  %s4 = inlined_call_operand.vmem [shape: f32[1,128], index: 4, kind: input, shape index: {}]
  %s5 = inlined_call_operand.vmem [shape: f32[128,2], index: 5, kind: input, shape index: {}]
  %s6 = inlined_call_operand.vmem [shape: f32[16,2], index: 6, kind: output, shape index: {}]
  %s7 = sld [smem:[#allocation0]]
  $region42: #{_lambda_.3} parent=0
    _
  %s9 = ssub.s32 1, %s7
  %s10 = scalar_select 0, %s9, %s7
  %11 = sst [smem:[#allocation3]] %s0
  %12 = sst [smem:[#allocation4]] %s1
  // Predicated region
  $region2: #{_lambda_.3} parent=0 // pred_check
    _
  $region3: #{_lambda_.3} parent=0 // pred_check_branch
    %14 = sbr.rel (0) target = $region5
  $region4: #{_lambda_.3} parent=0 // pred_region
    _
  $region5: #{_lambda_.3} parent=0 // pred_fallthru
    _
  // Predicated region
  $region6: #{_lambda_.3} parent=0 // pred_check
    _
  $region7: #{_lambda_.3} parent=0 // pred_check_branch
    %16 = sbr.rel (0) target = $region9
  $region8: #{_lambda_.3} parent=0 // pred_region
    _
  $region9: #{_lambda_.3} parent=0 // pred_fallthru
    _
  // Predicated region
  $region10: #{_lambda_.3} parent=0 // pred_check
    _
  $region11: #{_lambda_.3} parent=0 // pred_check_branch
    %18 = sbr.rel (0) target = $region13
  $region12: #{_lambda_.3} parent=0 // pred_region
    _
  $region13: #{_lambda_.3} parent=0 // pred_fallthru
    _
  // Predicated region
  $region14: #{_lambda_.3} parent=0 // pred_check
    _
  $region15: #{_lambda_.3} parent=0 // pred_check_branch
    %20 = sbr.rel (0) target = $region17
  $region16: #{_lambda_.3} parent=0 // pred_region
    _
  $region17: #{_lambda_.3} parent=0 // pred_fallthru
    _
  // Predicated region
  $region18: #{_lambda_.3} parent=0 // pred_check
    _
  $region19: #{_lambda_.3} parent=0 // pred_check_branch
    %22 = sbr.rel (0) target = $region21
  $region20: #{_lambda_.3} parent=0 // pred_region
    _
  $region21: #{_lambda_.3} parent=0 // pred_fallthru
    _
  // Predicated region
  $region22: #{_lambda_.3} parent=0 // pred_check
    _
  $region23: #{_lambda_.3} parent=0 // pred_check_branch
    %24 = sbr.rel (0) target = $region25
  $region24: #{_lambda_.3} parent=0 // pred_region
    _
  $region25: #{_lambda_.3} parent=0 // pred_fallthru
    _
  %p25 = scmp.eq.s32.totalorder 0, 0
  // Predicated region
  $region26: #{_lambda_.3} parent=0 // pred_check
    %p26 = pneg %p25
  $region27: #{_lambda_.3} parent=0 // pred_check_branch
    %28 = sbr.rel (%p26) target = $region29
  $region28: #{_lambda_.3} parent=0 // pred_region
    %29 = vst [vmem:[#allocation2] sm:$0xff] 0.0
    %30 = vst [vmem:[#allocation2 + $0x8] sm:$0xff] 0.0
  $region29: #{_lambda_.3} parent=0 // pred_fallthru
    _
  %v31 = vld [vmem:[#allocation2] sm:$0xff]
  %v32 = vld [vmem:[#allocation2 + $0x8] sm:$0xff]
  %v33 = vld [vmem:[%s2] sm:$0xff]
  %v34 = vld [vmem:[%s2 + $0x8] sm:$0xff]
  %v35 = vld [vmem:[%s3] sm:$0xff]
  %v36 = vld [vmem:[%s3 + $0x8] sm:$0xff]
  %v37 = vld [vmem:[%s3 + $0x10] sm:$0xff]
  %v38 = vld [vmem:[%s3 + $0x18] sm:$0xff]
  %v39 = vld [vmem:[%s3 + $0x20] sm:$0xff]
  %v40 = vld [vmem:[%s3 + $0x28] sm:$0xff]
  %v41 = vld [vmem:[%s3 + $0x30] sm:$0xff]
  %v42 = vld [vmem:[%s3 + $0x38] sm:$0xff]
  %v43 = vld [vmem:[%s3 + $0x40] sm:$0xff]
  %v44 = vld [vmem:[%s3 + $0x48] sm:$0xff]
  %v45 = vld [vmem:[%s3 + $0x50] sm:$0xff]
  %v46 = vld [vmem:[%s3 + $0x58] sm:$0xff]
  %v47 = vld [vmem:[%s3 + $0x60] sm:$0xff]
  %v48 = vld [vmem:[%s3 + $0x68] sm:$0xff]
  %v49 = vld [vmem:[%s3 + $0x70] sm:$0xff]
  %v50 = vld [vmem:[%s3 + $0x78] sm:$0xff]
  %51 = vmatprep.subr.mxu0 0.0
  %52 = vmatpush1.msra.mxu0 %v35
  %53 = vmatprep.subr.mxu0 0.0
  %54 = vmatpush1.msra.mxu0 %v36
  %55 = vmatprep.subr.mxu0 0.0
  %56 = vmatpush1.msra.mxu0 %v37
  %57 = vmatprep.subr.mxu0 0.0
  %58 = vmatpush1.msra.mxu0 %v38
  %59 = vmatprep.subr.mxu0 0.0
  %60 = vmatpush1.msra.mxu0 %v39
  %61 = vmatprep.subr.mxu0 0.0
  %62 = vmatpush1.msra.mxu0 %v40
  %63 = vmatprep.subr.mxu0 0.0
  %64 = vmatpush1.msra.mxu0 %v41
  %65 = vmatprep.subr.mxu0 0.0
  %66 = vmatpush1.msra.mxu0 %v42
  %67 = vmatprep.subr.mxu0 0.0
  %68 = vmatpush1.msra.mxu0 %v43
  %69 = vmatprep.subr.mxu0 0.0
  %70 = vmatpush1.msra.mxu0 %v44
  %71 = vmatprep.subr.mxu0 0.0
  %72 = vmatpush1.msra.mxu0 %v45
  %73 = vmatprep.subr.mxu0 0.0
  %74 = vmatpush1.msra.mxu0 %v46
  %75 = vmatprep.subr.mxu0 0.0
  %76 = vmatpush1.msra.mxu0 %v47
  %77 = vmatprep.subr.mxu0 0.0
  %78 = vmatpush1.msra.mxu0 %v48
  %79 = vmatprep.subr.mxu0 0.0
  %80 = vmatpush1.msra.mxu0 %v49
  %81 = vmatprep.subr.mxu0 0.0
  %82 = vmatpush1.msra.mxu0 %v50
  %83 = vmatprep.subr.mxu0 0.0
  %84 = vmatpush1.msra.mxu0 0.0
  %85 = vmatprep.subr.mxu0 0.0
  %86 = vmatpush1.msra.mxu0 0.0
  %87 = vmatprep.subr.mxu0 0.0
  %88 = vmatpush1.msra.mxu0 0.0
  %89 = vmatprep.subr.mxu0 0.0
  %90 = vmatpush1.msra.mxu0 0.0
  %91 = vmatprep.subr.mxu0 0.0
  %92 = vmatpush1.msra.mxu0 0.0
  %93 = vmatprep.subr.mxu0 0.0
  %94 = vmatpush1.msra.mxu0 0.0
  %95 = vmatprep.subr.mxu0 0.0
  %96 = vmatpush1.msra.mxu0 0.0
  %97 = vmatprep.subr.mxu0 0.0
  %98 = vmatpush1.msra.mxu0 0.0
  %99 = vmatprep.subr.mxu0 0.0
  %100 = vmatpush1.msra.mxu0 0.0
  %101 = vmatprep.subr.mxu0 0.0
  %102 = vmatpush1.msra.mxu0 0.0
  %103 = vmatprep.subr.mxu0 0.0
  %104 = vmatpush1.msra.mxu0 0.0
  %105 = vmatprep.subr.mxu0 0.0
  %106 = vmatpush1.msra.mxu0 0.0
  %107 = vmatprep.subr.mxu0 0.0
  %108 = vmatpush1.msra.mxu0 0.0
  %109 = vmatprep.subr.mxu0 0.0
  %110 = vmatpush1.msra.mxu0 0.0
  %111 = vmatprep.subr.mxu0 0.0
  %112 = vmatpush1.msra.mxu0 0.0
  %113 = vmatprep.subr.mxu0 0.0
  %114 = vmatpush1.msra.mxu0 0.0
  %115 = vmatprep.mubr.f32.mxu0 0.0
  %116 = vmatmul.mubr.f32.gmra.mrb[0].mxu0 %v33
  %v117 = vpop.f32.mrb[0].mxu0
  %v118 = vadd.f32 0.0, %v117
  %v119 = vpop.f32.mrb[0].mxu0
  %120 = vmatprep.mubr.f32.mxu0 0.0
  %121 = vmatmul.mubr.f32.gmra.mrb[0].mxu0 %v34
  %v122 = vpop.f32.mrb[0].mxu0
  %v123 = vadd.f32 0.0, %v122
  %v124 = vpop.f32.mrb[0].mxu0
  %125 = vdwg.mxu0
  %v126 = vadd.f32 %v31, %v118
  %v127 = vadd.f32 %v32, %v123
  %128 = vst [vmem:[#allocation2] sm:$0xff] %v126
  %129 = vst [vmem:[#allocation2 + $0x8] sm:$0xff] %v127
  // Predicated region
  $region30: #{_lambda_.3} parent=0 // pred_check
    %p130 = pneg %p25
  $region31: #{_lambda_.3} parent=0 // pred_check_branch
    %132 = sbr.rel (%p130) target = $region33
  $region32: #{_lambda_.3} parent=0 // pred_region
    %v133 = vld [vmem:[#allocation2] sm:$0xff]
    %v134 = vld [vmem:[#allocation2 + $0x8] sm:$0xff]
    %v135 = vld [vmem:[%s4] sm:$0x1]
    %v137 = vlaneseq
    %v138 = vshrl.u32 %v137, 7
    %v139 = vsub.s32 0, %v138
    %v140 = vrot.slane %v135, %v139
    %v142 = vadd.f32 %v133, %v140
    %v143 = vadd.f32 %v134, %v140
    %s144 = sld [smem:[#allocation3]]
    %vm145 = vcmp.gt.f32.partialorder %v142, 0.0
    %vm146 = vcmp.gt.f32.partialorder %v143, 0.0
    %v147 = vstv %s144
    %v148 = vmul.f32 %v147, %v142
    %v149 = vmul.f32 %v147, %v143
    %v150 = vsel %vm145, %v142, %v148
    %v151 = vsel %vm146, %v143, %v149
    %v152 = vld [vmem:[%s5] sm:$0xff]
    %v153 = vld [vmem:[%s5 + $0x8] sm:$0xff]
    %v154 = vld [vmem:[%s5 + $0x10] sm:$0xff]
    %v155 = vld [vmem:[%s5 + $0x18] sm:$0xff]
    %v156 = vld [vmem:[%s5 + $0x20] sm:$0xff]
    %v157 = vld [vmem:[%s5 + $0x28] sm:$0xff]
    %v158 = vld [vmem:[%s5 + $0x30] sm:$0xff]
    %v159 = vld [vmem:[%s5 + $0x38] sm:$0xff]
    %v160 = vld [vmem:[%s5 + $0x40] sm:$0xff]
    %v161 = vld [vmem:[%s5 + $0x48] sm:$0xff]
    %v162 = vld [vmem:[%s5 + $0x50] sm:$0xff]
    %v163 = vld [vmem:[%s5 + $0x58] sm:$0xff]
    %v164 = vld [vmem:[%s5 + $0x60] sm:$0xff]
    %v165 = vld [vmem:[%s5 + $0x68] sm:$0xff]
    %v166 = vld [vmem:[%s5 + $0x70] sm:$0xff]
    %v167 = vld [vmem:[%s5 + $0x78] sm:$0xff]
    %s168 = sld [smem:[#allocation4]]
    %v169 = vstv %s168
    %170 = vmatprep.subr.mxu0 0.0
    %171 = vmatpush1.msra.mxu0 %v152
    %172 = vmatprep.subr.mxu0 0.0
    %173 = vmatpush1.msra.mxu0 %v153
    %174 = vmatprep.subr.mxu0 0.0
    %175 = vmatpush1.msra.mxu0 %v154
    %176 = vmatprep.subr.mxu0 0.0
    %177 = vmatpush1.msra.mxu0 %v155
    %178 = vmatprep.subr.mxu0 0.0
    %179 = vmatpush1.msra.mxu0 %v156
    %180 = vmatprep.subr.mxu0 0.0
    %181 = vmatpush1.msra.mxu0 %v157
    %182 = vmatprep.subr.mxu0 0.0
    %183 = vmatpush1.msra.mxu0 %v158
    %184 = vmatprep.subr.mxu0 0.0
    %185 = vmatpush1.msra.mxu0 %v159
    %186 = vmatprep.subr.mxu0 0.0
    %187 = vmatpush1.msra.mxu0 %v160
    %188 = vmatprep.subr.mxu0 0.0
    %189 = vmatpush1.msra.mxu0 %v161
    %190 = vmatprep.subr.mxu0 0.0
    %191 = vmatpush1.msra.mxu0 %v162
    %192 = vmatprep.subr.mxu0 0.0
    %193 = vmatpush1.msra.mxu0 %v163
    %194 = vmatprep.subr.mxu0 0.0
    %195 = vmatpush1.msra.mxu0 %v164
    %196 = vmatprep.subr.mxu0 0.0
    %197 = vmatpush1.msra.mxu0 %v165
    %198 = vmatprep.subr.mxu0 0.0
    %199 = vmatpush1.msra.mxu0 %v166
    %200 = vmatprep.subr.mxu0 0.0
    %201 = vmatpush1.msra.mxu0 %v167
    %202 = vmatprep.subr.mxu0 0.0
    %203 = vmatpush1.msra.mxu0 0.0
    %204 = vmatprep.subr.mxu0 0.0
    %205 = vmatpush1.msra.mxu0 0.0
    %206 = vmatprep.subr.mxu0 0.0
    %207 = vmatpush1.msra.mxu0 0.0
    %208 = vmatprep.subr.mxu0 0.0
    %209 = vmatpush1.msra.mxu0 0.0
    %210 = vmatprep.subr.mxu0 0.0
    %211 = vmatpush1.msra.mxu0 0.0
    %212 = vmatprep.subr.mxu0 0.0
    %213 = vmatpush1.msra.mxu0 0.0
    %214 = vmatprep.subr.mxu0 0.0
    %215 = vmatpush1.msra.mxu0 0.0
    %216 = vmatprep.subr.mxu0 0.0
    %217 = vmatpush1.msra.mxu0 0.0
    %218 = vmatprep.subr.mxu0 0.0
    %219 = vmatpush1.msra.mxu0 0.0
    %220 = vmatprep.subr.mxu0 0.0
    %221 = vmatpush1.msra.mxu0 0.0
    %222 = vmatprep.subr.mxu0 0.0
    %223 = vmatpush1.msra.mxu0 0.0
    %224 = vmatprep.subr.mxu0 0.0
    %225 = vmatpush1.msra.mxu0 0.0
    %226 = vmatprep.subr.mxu0 0.0
    %227 = vmatpush1.msra.mxu0 0.0
    %228 = vmatprep.subr.mxu0 0.0
    %229 = vmatpush1.msra.mxu0 0.0
    %230 = vmatprep.subr.mxu0 0.0
    %231 = vmatpush1.msra.mxu0 0.0
    %232 = vmatprep.subr.mxu0 0.0
    %233 = vmatpush1.msra.mxu0 0.0
    %234 = vmatprep.mubr.f32.mxu0 0.0
    %235 = vmatmul.mubr.f32.gmra.mrb[0].mxu0 %v150
    %v236 = vpop.f32.mrb[0].mxu0
    %v237 = vadd.f32 %v169, %v236
    %v238 = vpop.f32.mrb[0].mxu0
    %239 = vmatprep.mubr.f32.mxu0 0.0
    %240 = vmatmul.mubr.f32.gmra.mrb[0].mxu0 %v151
    %v241 = vpop.f32.mrb[0].mxu0
    %v242 = vadd.f32 %v169, %v241
    %v243 = vpop.f32.mrb[0].mxu0
    %244 = vdwg.mxu0
    %vm245 = vcmask 15360
    %246 = vst.msk [vmem:[%s6] sm:$0xff] %vm245, %v237
    %247 = vst.msk [vmem:[%s6 + $0x8] sm:$0xff] %vm245, %v242
  $region33: #{_lambda_.3} parent=0 // pred_fallthru
    _
  // Predicated region
  $region34: #{_lambda_.3} parent=0 // pred_check
    _
  $region35: #{_lambda_.3} parent=0 // pred_check_branch
    %249 = sbr.rel (0) target = $region37
  $region36: #{_lambda_.3} parent=0 // pred_region
    _
  $region37: #{_lambda_.3} parent=0 // pred_fallthru
    _
  // Predicated region
  $region38: #{_lambda_.3} parent=0 // pred_check
    _
  $region39: #{_lambda_.3} parent=0 // pred_check_branch
    %251 = sbr.rel (0) target = $region41
  $region40: #{_lambda_.3} parent=0 // pred_region
    _
  $region41: #{_lambda_.3} parent=0 // pred_fallthru
    _

</llo_original>
